<compile_context>
chip_gen: v5e
topology: v5e:2x2
jax: 0.10.0
libtpu: 0.0.40
codegen_flags: <defaults>
</compile_context>

<pallas_src>
import jax
import jax.numpy as jnp
from jax.experimental import pallas as pl
from jax.experimental.pallas import tpu as pltpu


def _taskselector_kernel(se1_ref, se2_ref, wa_ref, wb_ref, u_ref, b_ref, out_ref):
    se1 = se1_ref[...]                                   # (TB, H) native dtype
    se2 = se2_ref[...]                                   # (TB, H) native dtype
    H = se1.shape[1]

    # ---- scores: tiny (2H -> 2) linear on the VPU, accumulated in f32 -------
    se1f = se1.astype(jnp.float32)
    se2f = se2.astype(jnp.float32)
    wa = wa_ref[...].astype(jnp.float32)                 # (2, H), VMEM-resident
    wb = wb_ref[...].astype(jnp.float32)                 # (2, H), VMEM-resident
    # Broadcast of the (1, H) weight rows is hoisted to a single use per grid
    # step; hidden under the HBM bound.
    s0 = jnp.sum(se1f * wa[0:1, :] + se2f * wb[0:1, :], axis=1, keepdims=True)
    s1 = jnp.sum(se1f * wa[1:2, :] + se2f * wb[1:2, :], axis=1, keepdims=True)

    post0 = jnp.maximum(s0 + b_ref[0], 0.0)              # relu(linear), bias from SMEM
    post1 = jnp.maximum(s1 + b_ref[1], 0.0)

    # ---- straight-through Gumbel-softmax, forward value only ----------------
    # gumbel computed in-kernel: logs go to the EUP slot (idle, free here).
    eps = 1e-20
    u = u_ref[...].astype(jnp.float32)                   # (TB, 2)
    g = -jnp.log(-jnp.log(u + eps) + eps)
    y0 = post0 + g[:, 0:1]
    y1 = post1 + g[:, 1:2]
    keep0 = y0 >= y1                                     # first-index tie-break (== argmax)

    # ---- gate each half directly in the native dtype ------------------------
    half0 = jnp.where(keep0, se1, jnp.zeros_like(se1))   # rf == 1 on chosen half, 0 else
    half1 = jnp.where(keep0, jnp.zeros_like(se2), se2)

    if H % 128 == 0:
        # lane-aligned halves: two full-width stores, no masking
        out_ref[:, :H] = half0
        out_ref[:, H:] = half1
    else:
        # lane-dense single store of the concatenated (TB, 2H) slab
        out_ref[...] = jnp.concatenate([half0, half1], axis=-1)
    # TODO(synk): backward-pass ST estimator ((y_hard - y).detach() + y) is a
    # gradient-only trick with no effect on the forward value; not emitted here.


def _round_up(x, m):
    return -(-x // m) * m


def _round_down(x, m):
    return (x // m) * m


def _choose_block_b(B, H, itemsize, tile_budget_bytes):
    # Per grid step, double-buffered working set per row:
    #   se1 (H) + se2 (H) + out (2H) in native dtype  +  u (2 x f32),  x2 buffers.
    bytes_per_row = 2 * (4 * H * itemsize + 2 * 4)
    max_rows = max(8, _round_down(tile_budget_bytes // bytes_per_row, 8))
    block_b = min(max_rows, 4096)
    if B >= 16:
        # force >= 2 grid steps: lets the "parallel" batch axis shard across
        # both v7x TensorCores and keeps the HBM<->VMEM pipeline alive.
        block_b = min(block_b, _round_up(_round_up(B, 2) // 2, 8))
    if block_b >= B:
        return B                      # single full block (any B, incl. non-mult-of-8)
    return block_b                    # multiple of 8; partial last block handled by Pallas


def taskselector_forward(se1, se2, W, b, u, *, block_b=None, vmem_limit_bytes=None):
    """se1, se2: (B, H) in native dtype; W: (2, 2H) Linear weight; b: (2,); u: (B, 2) uniform."""
    B, H = se1.shape
    C = W.shape[0]
    assert C == 2, "Taskselector.forward hard-codes two source tasks"
    assert W.shape[1] == 2 * H and u.shape == (B, C)

    dtype = se1.dtype
    wa = W[:, :H].astype(jnp.float32)            # (2, H): weights multiplying se1
    wb = W[:, H:].astype(jnp.float32)            # (2, H): weights multiplying se2
    b1 = jnp.asarray(b, jnp.float32).reshape(C)  # (2,) -> SMEM
    u = u.astype(jnp.float32)

    # --- VMEM-aware tiling ----------------------------------------------------
    try:
        info = pltpu.get_tpu_info()
        vmem_cap = int(getattr(info, "vmem_capacity_bytes", 64 << 20))
    except Exception:
        vmem_cap = 64 << 20                      # conservative (v7x per-TC physical)
    if vmem_limit_bytes is None:
        # generous on v5e/v6e (128 MiB physical), bounded below physical on v7x
        vmem_limit_bytes = min(int(0.75 * vmem_cap), 96 << 20)
    tile_budget = int(0.70 * vmem_limit_bytes)   # headroom for weights / internal scratch

    if block_b is None:
        block_b = _choose_block_b(B, H, jnp.dtype(dtype).itemsize, tile_budget)
    grid = (pl.cdiv(B, block_b),)

    return pl.pallas_call(
        _taskselector_kernel,
        out_shape=jax.ShapeDtypeStruct((B, 2 * H), dtype),
        grid=grid,
        in_specs=[
            pl.BlockSpec((block_b, H), lambda i: (i, 0)),                # se1
            pl.BlockSpec((block_b, H), lambda i: (i, 0)),                # se2
            pl.BlockSpec((C, H), lambda i: (0, 0)),                      # wa (resident)
            pl.BlockSpec((C, H), lambda i: (0, 0)),                      # wb (resident)
            pl.BlockSpec((block_b, C), lambda i: (i, 0)),                # uniform noise
            pl.BlockSpec(memory_space=pltpu.MemorySpace.SMEM),           # bias (scalars)
        ],
        out_specs=pl.BlockSpec((block_b, 2 * H), lambda i: (i, 0)),
        compiler_params=pltpu.CompilerParams(
            dimension_semantics=("parallel",),
            vmem_limit_bytes=vmem_limit_bytes,
        ),
    )(se1, se2, wa, wb, u, b1)


def _reference_forward(se1, se2, W, b, u):
    """Pure-JAX reproduction of the original PyTorch forward (full softmax chain)."""
    eps = 1e-20
    se = jnp.concatenate([se1, se2], axis=1)
    post = jnp.maximum(se @ W.T + b, 0.0)
    logits = jax.nn.log_softmax(post, axis=1)
    y = logits + (-jnp.log(-jnp.log(u + eps) + eps))
    probs = jax.nn.softmax(y, axis=1)
    sel = jax.nn.one_hot(jnp.argmax(probs, axis=1), probs.shape[1], dtype=se.dtype)
    H = se1.shape[1]
    rf = jnp.concatenate(
        [jnp.broadcast_to(sel[:, 0:1], (se.shape[0], H)),
         jnp.broadcast_to(sel[:, 1:2], (se.shape[0], H))], axis=1)
    return se * rf


if __name__ == "__main__":
    B, H, C = 8, 64, 2          # batch, per-task hidden_dim, num_source_tasks
    key = jax.random.PRNGKey(0)
    k1, k2, k3, k4, k5 = jax.random.split(key, 5)

    se1 = jax.random.normal(k1, (B, H), jnp.float32)
    se2 = jax.random.normal(k2, (B, H), jnp.float32)
    W = 0.1 * jax.random.normal(k3, (C, 2 * H), jnp.float32)   # Linear(2H, C) weight
    b = 0.1 * jax.random.normal(k4, (C,), jnp.float32)         # Linear bias
    u = jax.random.uniform(k5, (B, C), jnp.float32)            # gumbel driver noise

    # f32 path vs the full softmax-chain reference
    out = jax.block_until_ready(taskselector_forward(se1, se2, W, b, u))
    ref = _reference_forward(se1, se2, W, b, u)
    assert out.shape == (B, 2 * H) and out.dtype == jnp.float32
    assert jnp.allclose(out, ref, atol=1e-5, rtol=1e-5), "mismatch vs reference"

    # native-dtype (bf16) path: no wrapper upcast, gating stays bf16
    out_bf16 = jax.block_until_ready(
        taskselector_forward(se1.astype(jnp.bfloat16), se2.astype(jnp.bfloat16), W, b, u))
    assert out_bf16.shape == (B, 2 * H) and out_bf16.dtype == jnp.bfloat16
    assert bool(jnp.all(jnp.isfinite(out_bf16.astype(jnp.float32))))

    print("KERNEL_OK")
</pallas_src>

<mosaic_0001>
module attributes {stable_mosaic.version = 11 : i64} {
  func.func @_taskselector_kernel(%arg0: i32, %arg1: memref<8x64xf32, #tpu.memory_space<vmem>>, %arg2: memref<8x64xf32, #tpu.memory_space<vmem>>, %arg3: memref<2x64xf32, #tpu.memory_space<vmem>>, %arg4: memref<2x64xf32, #tpu.memory_space<vmem>>, %arg5: memref<8x2xf32, #tpu.memory_space<vmem>>, %arg6: memref<2xf32, #tpu.memory_space<smem>>, %arg7: memref<8x128xf32, #tpu.memory_space<vmem>>) attributes {dimension_semantics = [#tpu.dimension_semantics<parallel>], iteration_bounds = array<i64: 1>, scalar_prefetch = 0 : i64, scratch_operands = 0 : i64, tpu.core_type = #tpu.core_type<tc>, window_params = [{transform_indices = @transform_0, window_bounds = array<i64: 8, 64>}, {transform_indices = @transform_1, window_bounds = array<i64: 8, 64>}, {pipeline_mode = #tpu.pipeline_mode<synchronous>, transform_indices = @transform_2, window_bounds = array<i64: 2, 64>}, {pipeline_mode = #tpu.pipeline_mode<synchronous>, transform_indices = @transform_3, window_bounds = array<i64: 2, 64>}, {transform_indices = @transform_4, window_bounds = array<i64: 8, 2>}, {transform_indices = @transform_5, window_bounds = array<i64: 2>}, {transform_indices = @transform_6, window_bounds = array<i64: 8, 128>}]} {
    %c0 = arith.constant 0 : index
    %c0_0 = arith.constant 0 : index
    %0 = vector.load %arg1[%c0, %c0_0] : memref<8x64xf32, #tpu.memory_space<vmem>>, vector<8x64xf32>
    %c0_1 = arith.constant 0 : index
    %c0_2 = arith.constant 0 : index
    %1 = vector.load %arg2[%c0_1, %c0_2] : memref<8x64xf32, #tpu.memory_space<vmem>>, vector<8x64xf32>
    %c0_3 = arith.constant 0 : index
    %c0_4 = arith.constant 0 : index
    %2 = vector.load %arg3[%c0_3, %c0_4] : memref<2x64xf32, #tpu.memory_space<vmem>>, vector<2x64xf32>
    %c0_5 = arith.constant 0 : index
    %c0_6 = arith.constant 0 : index
    %3 = vector.load %arg4[%c0_5, %c0_6] : memref<2x64xf32, #tpu.memory_space<vmem>>, vector<2x64xf32>
    %4 = vector.extract_strided_slice %2 {offsets = [0, 0], sizes = [1, 64], strides = [1, 1]} : vector<2x64xf32> to vector<1x64xf32>
    %5 = vector.broadcast %4 : vector<1x64xf32> to vector<8x64xf32>
    %6 = arith.mulf %0, %5 : vector<8x64xf32>
    %7 = vector.extract_strided_slice %3 {offsets = [0, 0], sizes = [1, 64], strides = [1, 1]} : vector<2x64xf32> to vector<1x64xf32>
    %8 = vector.broadcast %7 : vector<1x64xf32> to vector<8x64xf32>
    %9 = arith.mulf %1, %8 : vector<8x64xf32>
    %10 = arith.addf %6, %9 : vector<8x64xf32>
    %cst = arith.constant dense<0.000000e+00> : vector<8xf32>
    %11 = vector.multi_reduction <add>, %10, %cst [1] : vector<8x64xf32> to vector<8xf32>
    %12 = vector.shape_cast %11 : vector<8xf32> to vector<8x1xf32>
    %13 = vector.extract_strided_slice %2 {offsets = [1, 0], sizes = [1, 64], strides = [1, 1]} : vector<2x64xf32> to vector<1x64xf32>
    %14 = vector.broadcast %13 : vector<1x64xf32> to vector<8x64xf32>
    %15 = arith.mulf %0, %14 : vector<8x64xf32>
    %16 = vector.extract_strided_slice %3 {offsets = [1, 0], sizes = [1, 64], strides = [1, 1]} : vector<2x64xf32> to vector<1x64xf32>
    %17 = vector.broadcast %16 : vector<1x64xf32> to vector<8x64xf32>
    %18 = arith.mulf %1, %17 : vector<8x64xf32>
    %19 = arith.addf %15, %18 : vector<8x64xf32>
    %cst_7 = arith.constant dense<0.000000e+00> : vector<8xf32>
    %20 = vector.multi_reduction <add>, %19, %cst_7 [1] : vector<8x64xf32> to vector<8xf32>
    %21 = vector.shape_cast %20 : vector<8xf32> to vector<8x1xf32>
    %c0_8 = arith.constant 0 : index
    %22 = memref.load %arg6[%c0_8] : memref<2xf32, #tpu.memory_space<smem>>
    %23 = vector.broadcast %22 : f32 to vector<8x1xf32>
    %24 = arith.addf %12, %23 : vector<8x1xf32>
    %cst_9 = arith.constant 0.000000e+00 : f32
    %25 = vector.broadcast %cst_9 : f32 to vector<8x1xf32>
    %26 = arith.maximumf %24, %25 : vector<8x1xf32>
    %c1 = arith.constant 1 : index
    %27 = memref.load %arg6[%c1] : memref<2xf32, #tpu.memory_space<smem>>
    %28 = vector.broadcast %27 : f32 to vector<8x1xf32>
    %29 = arith.addf %21, %28 : vector<8x1xf32>
    %cst_10 = arith.constant 0.000000e+00 : f32
    %30 = vector.broadcast %cst_10 : f32 to vector<8x1xf32>
    %31 = arith.maximumf %29, %30 : vector<8x1xf32>
    %c0_11 = arith.constant 0 : index
    %c0_12 = arith.constant 0 : index
    %32 = vector.load %arg5[%c0_11, %c0_12] : memref<8x2xf32, #tpu.memory_space<vmem>>, vector<8x2xf32>
    %cst_13 = arith.constant 9.99999968E-21 : f32
    %33 = vector.broadcast %cst_13 : f32 to vector<8x2xf32>
    %34 = arith.addf %32, %33 : vector<8x2xf32>
    %35 = math.log %34 : vector<8x2xf32>
    %cst_14 = arith.constant 0.000000e+00 : f32
    %36 = vector.broadcast %cst_14 : f32 to vector<8x2xf32>
    %37 = arith.subf %36, %35 : vector<8x2xf32>
    %cst_15 = arith.constant 9.99999968E-21 : f32
    %38 = vector.broadcast %cst_15 : f32 to vector<8x2xf32>
    %39 = arith.addf %37, %38 : vector<8x2xf32>
    %40 = math.log %39 : vector<8x2xf32>
    %cst_16 = arith.constant 0.000000e+00 : f32
    %41 = vector.broadcast %cst_16 : f32 to vector<8x2xf32>
    %42 = arith.subf %41, %40 : vector<8x2xf32>
    %43 = vector.extract_strided_slice %42 {offsets = [0, 0], sizes = [8, 1], strides = [1, 1]} : vector<8x2xf32> to vector<8x1xf32>
    %44 = arith.addf %26, %43 : vector<8x1xf32>
    %45 = vector.extract_strided_slice %42 {offsets = [0, 1], sizes = [8, 1], strides = [1, 1]} : vector<8x2xf32> to vector<8x1xf32>
    %46 = arith.addf %31, %45 : vector<8x1xf32>
    %47 = arith.cmpf oge, %44, %46 : vector<8x1xf32>
    %cst_17 = arith.constant 0.000000e+00 : f32
    %48 = vector.broadcast %cst_17 : f32 to vector<8x64xf32>
    %49 = vector.shape_cast %47 : vector<8x1xi1> to vector<8x1xi1>
    %50 = vector.broadcast %49 : vector<8x1xi1> to vector<8x64xi1>
    %51 = arith.select %50, %0, %48 : vector<8x64xi1>, vector<8x64xf32>
    %cst_18 = arith.constant 0.000000e+00 : f32
    %52 = vector.broadcast %cst_18 : f32 to vector<8x64xf32>
    %53 = vector.shape_cast %47 : vector<8x1xi1> to vector<8x1xi1>
    %54 = vector.broadcast %53 : vector<8x1xi1> to vector<8x64xi1>
    %55 = arith.select %54, %52, %1 : vector<8x64xi1>, vector<8x64xf32>
    %56 = tpu.concatenate %51, %55 in 1 : vector<8x64xf32>, vector<8x64xf32> -> vector<8x128xf32>
    %c0_19 = arith.constant 0 : index
    %c0_20 = arith.constant 0 : index
    %57 = vector.load %arg7[%c0_19, %c0_20] : memref<8x128xf32, #tpu.memory_space<vmem>>, vector<8x128xf32>
    tpu.vector_store %arg7[%c0_19, %c0_20], %56 {strides = array<i32>} : memref<8x128xf32, #tpu.memory_space<vmem>>, vector<8x128xf32>,
    return
  }
  func.func @transform_0(%arg0: i32) -> (i32, i32) {
    %c0_i32 = arith.constant 0 : i32
    %c0_i32_0 = arith.constant 0 : i32
    return %arg0, %c0_i32 : i32, i32
  }
  func.func @transform_1(%arg0: i32) -> (i32, i32) {
    %c0_i32 = arith.constant 0 : i32
    %c0_i32_0 = arith.constant 0 : i32
    return %arg0, %c0_i32 : i32, i32
  }
  func.func @transform_2(%arg0: i32) -> (i32, i32) {
    %c0_i32 = arith.constant 0 : i32
    %c0_i32_0 = arith.constant 0 : i32
    %c0_i32_1 = arith.constant 0 : i32
    return %c0_i32, %c0_i32_0 : i32, i32
  }
  func.func @transform_3(%arg0: i32) -> (i32, i32) {
    %c0_i32 = arith.constant 0 : i32
    %c0_i32_0 = arith.constant 0 : i32
    %c0_i32_1 = arith.constant 0 : i32
    return %c0_i32, %c0_i32_0 : i32, i32
  }
  func.func @transform_4(%arg0: i32) -> (i32, i32) {
    %c0_i32 = arith.constant 0 : i32
    %c0_i32_0 = arith.constant 0 : i32
    return %arg0, %c0_i32 : i32, i32
  }
  func.func @transform_5(%arg0: i32) -> i32 {
    %c0_i32 = arith.constant 0 : i32
    %c0_i32_0 = arith.constant 0 : i32
    return %c0_i32 : i32
  }
  func.func @transform_6(%arg0: i32) -> (i32, i32) {
    %c0_i32 = arith.constant 0 : i32
    %c0_i32_0 = arith.constant 0 : i32
    return %arg0, %c0_i32 : i32, i32
  }
}

</mosaic_0001>

<llo_original>
// kernel: tpu_custom_call.1
$region0: #{tpu_custom_call.1}
  #allocation0 [shape = 'u32[]', space=smem, size = 0x4, offset = 0x4, fixed_abs, tag = 'smem constant byte address 0x4 - core index']
  #allocation1 [shape = 'u32[72,128]{1,0:T(1,128)}', space=vmem, size = 0x9000, scoped, tag = 'internal scratch']
  %s0 = inlined_call_operand.vmem [shape: f32[8,64], index: 0, kind: input, shape index: {}]
  %s1 = inlined_call_operand.hbm [shape: f32[8,64], index: 1, kind: input, shape index: {}]
  %s2 = inlined_call_operand.vmem [shape: f32[2,64], index: 2, kind: input, shape index: {}]
  %s3 = inlined_call_operand.hbm [shape: f32[2,64], index: 3, kind: input, shape index: {}]
  %s4 = inlined_call_operand.vmem [shape: f32[8,2], index: 4, kind: input, shape index: {}]
  %s5 = inlined_call_operand.vmem [shape: f32[2], index: 5, kind: input, shape index: {}]
  %s6 = inlined_call_operand.hbm [shape: f32[8,128], index: 6, kind: output, shape index: {}]
  %s7 = sld [smem:[#allocation0]]
  $region46: #{tpu_custom_call.1} parent=0
    _
  %s9 = ssub.s32 1, %s7
  %s10 = scalar_select 0, %s9, %s7
  $region1: #{tpu_custom_call.1} parent=0
    #allocation2 [shape = 'u8[4096]{0}', space=vmem, size = 0x1000, scoped, tag = 'input window, operand 1, single buffered']
    #allocation3 [shape = 's32[1]{0}', space=sflag, size = 0x4, scoped, tag = 'scoped memory for tpu_custom_call.1']
    #allocation4 [shape = 's32[1]{0}', space=sflag, size = 0x4, scoped, tag = 'scoped memory for tpu_custom_call.1']
    #allocation5 [shape = 's32[1]{0}', space=sflag, size = 0x4, scoped, tag = 'scoped memory for tpu_custom_call.1']
    #allocation6 [shape = 'u8[1024]{0}', space=vmem, size = 0x400, scoped, tag = 'input window, operand 3, single buffered']
    #allocation7 [shape = 's32[1]{0}', space=sflag, size = 0x4, scoped, tag = 'scoped memory for tpu_custom_call.1']
    #allocation8 [shape = 'u8[512]{0}', space=smem, size = 0x200, scoped, tag = 'input window, operand 5, single buffered']
    #allocation9 [shape = 'u8[4096]{0}', space=vmem, size = 0x1000, scoped, tag = 'output window, operand 0, single buffered']
    %11 = vsyncpa [#allocation3], 0
    %12 = vsyncpa [#allocation7], 0
    %13 = vsyncpa [#allocation5], 0
    %14 = vsyncpa [#allocation4], 0
    // Predicated region
    $region2: #{tpu_custom_call.1} parent=1 // pred_check
      _
    $region3: #{tpu_custom_call.1} parent=1 // pred_check_branch
      %16 = sbr.rel (0) target = $region5
    $region4: #{tpu_custom_call.1} parent=1 // pred_region
      _
    $region5: #{tpu_custom_call.1} parent=1 // pred_fallthru
      _
    // Predicated region
    $region6: #{tpu_custom_call.1} parent=1 // pred_check
      _
    $region7: #{tpu_custom_call.1} parent=1 // pred_check_branch
      %18 = sbr.rel (0) target = $region9
    $region8: #{tpu_custom_call.1} parent=1 // pred_region
      %20 = vsyncadd [#allocation3], 0
      %s22 = sshll.u32 %s1, 4
      %s23 = int_to_ptr.hbm [resolvable:$true] %s22
      %s24 = sshll.u32 [#allocation2], 4
      %s25 = int_to_ptr.vmem [resolvable:$true] %s24
      %27 = dma.hbm_to_vmem [thread:$0]  %s23, 128, %s25, [#allocation3]
    $region9: #{tpu_custom_call.1} parent=1 // pred_fallthru
      _
    // Predicated region
    $region10: #{tpu_custom_call.1} parent=1 // pred_check
      _
    $region11: #{tpu_custom_call.1} parent=1 // pred_check_branch
      %29 = sbr.rel (0) target = $region13
    $region12: #{tpu_custom_call.1} parent=1 // pred_region
      _
    $region13: #{tpu_custom_call.1} parent=1 // pred_fallthru
      _
    // Predicated region
    $region14: #{tpu_custom_call.1} parent=1 // pred_check
      _
    $region15: #{tpu_custom_call.1} parent=1 // pred_check_branch
      %31 = sbr.rel (0) target = $region17
    $region16: #{tpu_custom_call.1} parent=1 // pred_region
      %33 = vsyncadd [#allocation7], 0
      %s35 = sshll.u32 %s3, 4
      %s36 = int_to_ptr.hbm [resolvable:$true] %s35
      %s37 = sshll.u32 [#allocation6], 4
      %s38 = int_to_ptr.vmem [resolvable:$true] %s37
      %40 = dma.hbm_to_vmem [thread:$0]  %s36, 32, %s38, [#allocation7]
    $region17: #{tpu_custom_call.1} parent=1 // pred_fallthru
      _
    // Predicated region
    $region18: #{tpu_custom_call.1} parent=1 // pred_check
      _
    $region19: #{tpu_custom_call.1} parent=1 // pred_check_branch
      %42 = sbr.rel (0) target = $region21
    $region20: #{tpu_custom_call.1} parent=1 // pred_region
      _
    $region21: #{tpu_custom_call.1} parent=1 // pred_fallthru
      _
    // Predicated region
    $region22: #{tpu_custom_call.1} parent=1 // pred_check
      _
    $region23: #{tpu_custom_call.1} parent=1 // pred_check_branch
      %44 = sbr.rel (0) target = $region25
    $region24: #{tpu_custom_call.1} parent=1 // pred_region
      %46 = vsyncadd [#allocation5], 0
      %s48 = sshll.u32 %s5, 4
      %s49 = int_to_ptr.vmem [resolvable:$true] %s48
      %51 = dma.vmem_to_smem %s49, 16, [#allocation8], [#allocation5]
    $region25: #{tpu_custom_call.1} parent=1 // pred_fallthru
      _
    // Predicated region
    $region26: #{tpu_custom_call.1} parent=1 // pred_check
      _
    $region27: #{tpu_custom_call.1} parent=1 // pred_check_branch
      %53 = sbr.rel (0) target = $region29
    $region28: #{tpu_custom_call.1} parent=1 // pred_region
      %55 = dma.done [#allocation3], 128
    $region29: #{tpu_custom_call.1} parent=1 // pred_fallthru
      _
    // Predicated region
    $region30: #{tpu_custom_call.1} parent=1 // pred_check
      _
    $region31: #{tpu_custom_call.1} parent=1 // pred_check_branch
      %57 = sbr.rel (0) target = $region33
    $region32: #{tpu_custom_call.1} parent=1 // pred_region
      %59 = dma.done [#allocation7], 32
    $region33: #{tpu_custom_call.1} parent=1 // pred_fallthru
      _
    // Predicated region
    $region34: #{tpu_custom_call.1} parent=1 // pred_check
      _
    $region35: #{tpu_custom_call.1} parent=1 // pred_check_branch
      %61 = sbr.rel (0) target = $region37
    $region36: #{tpu_custom_call.1} parent=1 // pred_region
      %63 = dma.done [#allocation5], 16
    $region37: #{tpu_custom_call.1} parent=1 // pred_fallthru
      _
    %64 = sfence
    %v65 = vld [vmem:[%s0] sm:$0xff]
    %v66 = vld [vmem:[#allocation2] sm:$0xff]
    %v67 = vld [vmem:[%s2] sm:$0x3]
    %v68 = vld [vmem:[#allocation6] sm:$0x3]
    %v69 = vperm.slane %v67, 0
    %v70 = vmul.f32 %v65, %v69
    %v71 = vperm.slane %v68, 0
    %v72 = vmul.f32 %v66, %v71
    %v73 = vadd.f32 %v70, %v72
    %vm74 = vcmask 523264
    %v75 = vsel %vm74, %v73, 0.0
    %76 = vadd.xlane.f32.xlu0 %v75
    %v77 = vpop.xlane.xlu0 %76
    %v78 = vperm.slane %v67, 1
    %v79 = vmul.f32 %v65, %v78
    %v80 = vperm.slane %v68, 1
    %v81 = vmul.f32 %v66, %v80
    %v82 = vadd.f32 %v79, %v81
    %v83 = vsel %vm74, %v82, 0.0
    %84 = vadd.xlane.f32.xlu0 %v83
    %v85 = vpop.xlane.xlu0 %84
    %s86 = sld [smem:[#allocation8]]
    %v87 = vstv %s86
    %v88 = vadd.f32 %v77, %v87
    %v89 = vmax.f32 %v88, 0.0
    %s90 = sld [smem:[#allocation8 + $0x1]]
    %v91 = vstv %s90
    %v92 = vadd.f32 %v85, %v91
    %v93 = vmax.f32 %v92, 0.0
    %v94 = vld [vmem:[%s4] sm:$0xff]
    %v95 = vadd.f32 %v94, 1e-20
    %v96 = vlog2.pop %v95
    %v97 = vmul.f32 %v96, 0.6931472
    %v98 = vsub.f32 0.0, %v97
    %v99 = vadd.f32 %v98, 1e-20
    %v100 = vlog2.pop %v99
    %v101 = vmul.f32 %v100, 0.6931472
    %v102 = vsub.f32 0.0, %v101
    %v103 = vadd.f32 %v89, %v102
    %v104 = vadd.f32 %v93, %v102
    %106 = vrot.lane.b32.xlu0 %v104, 127
    %v107 = vpop.permute.xlu0 %106
    %vm109 = vcmp.ge.f32.partialorder %v103, %v107
    %v110 = vsel %vm109, 1, 0
    %111 = vset.pattern.permute.xlu0 0
    %112 = vperm.xlu0 %111, %v110
    %v113 = vpop.permute.xlu0 %112
    %vm114 = vcmp.eq.s32.totalorder %v113, 1
    %v115 = vsel %vm114, %v65, 0.0
    %v116 = vsel %vm114, 0.0, %v66
    %118 = vrot.lane.b32.xlu0 %v116, 64
    %v119 = vpop.permute.xlu0 %118
    %v121 = vsel %vm74, %v115, %v119
    %122 = vst [vmem:[#allocation9] sm:$0xff] %v121
    // Predicated region
    $region38: #{tpu_custom_call.1} parent=1 // pred_check
      _
    $region39: #{tpu_custom_call.1} parent=1 // pred_check_branch
      %124 = sbr.rel (0) target = $region41
    $region40: #{tpu_custom_call.1} parent=1 // pred_region
      %126 = vsyncadd [#allocation4], 0
      %s128 = sshll.u32 [#allocation9], 4
      %s129 = int_to_ptr.vmem [resolvable:$true] %s128
      %s130 = sshll.u32 %s6, 4
      %s131 = int_to_ptr.hbm [resolvable:$true] %s130
      %133 = dma.vmem_to_hbm [thread:$0]  %s129, 128, %s131, [#allocation4]
    $region41: #{tpu_custom_call.1} parent=1 // pred_fallthru
      _
    // Predicated region
    $region42: #{tpu_custom_call.1} parent=1 // pred_check
      _
    $region43: #{tpu_custom_call.1} parent=1 // pred_check_branch
      %135 = sbr.rel (0) target = $region45
    $region44: #{tpu_custom_call.1} parent=1 // pred_region
      %137 = dma.done [#allocation4], 128
    $region45: #{tpu_custom_call.1} parent=1 // pred_fallthru
      _
    %138 = vsyncpa [#allocation3], 1
    %139 = vsyncpa [#allocation7], 1
    %140 = vsyncpa [#allocation4], 1
    %141 = vsyncpa [#allocation5], 1

</llo_original>
